<compile_context>
chip_gen: v5e
topology: v5e:2x2
jax: 0.10.0
libtpu: 0.0.40
codegen_flags: <defaults>
</compile_context>

<pallas_src>
import jax
import jax.numpy as jnp
from jax.experimental import pallas as pl
from jax.experimental.pallas import tpu as pltpu


def _round_up(x, m):
    return (x + m - 1) // m * m


# --------------------------------------------------------------------------
# Pallas kernel: one (batch, T-tile) per grid step, (C, T) layout in VMEM
# (time on lanes -> lane-dense output stores).
# --------------------------------------------------------------------------
def _make_kernel(*, kernel_size, dilation, padding, t_tile, halo_off,
                 has_downsample):
    K, d, p = kernel_size, dilation, padding
    off = halo_off          # 128-lane-aligned start of the data region
    Tt = t_tile

    def body(x_ref, w1_ref, b1_ref, w2_ref, b2_ref, *rest):
        if has_downsample:
            wd_ref, bd_ref, out_ref, xh_ref, hh_ref, x1s_ref, x2s_ref = rest
        else:
            out_ref, xh_ref, hh_ref, x1s_ref, x2s_ref = rest
            wd_ref = bd_ref = None

        C_in = x_ref.shape[1]
        C_out = out_ref.shape[1]

        t = pl.program_id(1)
        nt = pl.num_programs(1)

        # Causal halo: buffer columns [off-p, off) hold the previous p time
        # steps.  Scratch persists across grid steps, so zeroing happens only
        # at the start of each sequence (small masked store).
        @pl.when(t == 0)
        def _():
            xh_ref[:, off - p:off] = jnp.zeros((C_in, p), xh_ref.dtype)
            hh_ref[:, off - p:off] = jnp.zeros((C_out, p), hh_ref.dtype)

        x_f32 = x_ref[0]                           # (C_in, Tt) f32
        x_bf = x_f32.astype(jnp.bfloat16)          # cast in-kernel (MXU operand)
        xh_ref[:, off:] = x_bf                     # aligned, unmasked bulk store

        # ---- conv1: tap slices written straight into the im2col scratch
        #      (no jnp.concatenate copy), then a single MXU matmul. ----------
        for k in range(K):
            x1s_ref[k * C_in:(k + 1) * C_in, :] = \
                xh_ref[:, off - p + k * d: off - p + k * d + Tt]
        h = jnp.dot(w1_ref[...], x1s_ref[...],
                    preferred_element_type=jnp.float32)
        h = jnp.maximum(h + b1_ref[...], 0.0)      # (C_out, Tt) f32
        # dropout1: identity (inference)

        # ---- conv2 ----------------------------------------------------------
        hh_ref[:, off:] = h.astype(jnp.bfloat16)
        for k in range(K):
            x2s_ref[k * C_out:(k + 1) * C_out, :] = \
                hh_ref[:, off - p + k * d: off - p + k * d + Tt]
        y = jnp.dot(w2_ref[...], x2s_ref[...],
                    preferred_element_type=jnp.float32)
        y = jnp.maximum(y + b2_ref[...], 0.0)      # (C_out, Tt) f32
        # dropout2: identity (inference)

        # ---- residual + final ReLU ------------------------------------------
        if has_downsample:
            res = jnp.dot(wd_ref[...], x_bf,
                          preferred_element_type=jnp.float32) + bd_ref[...]
        else:
            res = x_f32                            # identity residual (C_in == C_out)

        out_ref[0] = jnp.maximum(y + res, 0.0).astype(out_ref.dtype)

        # Carry the last p time steps of x and h into the halo region for the
        # next T tile of the same sequence (wrapper guarantees Tt >= p when
        # nt > 1).  Skipped on the last tile; t==0 of the next sequence resets.
        @pl.when(t < nt - 1)
        def _():
            xh_ref[:, off - p:off] = xh_ref[:, off + Tt - p:]
            hh_ref[:, off - p:off] = hh_ref[:, off + Tt - p:]

    return body


# --------------------------------------------------------------------------
# Tile / VMEM-budget helpers
# --------------------------------------------------------------------------
def _choose_t_tile(T, padding, C_in, C_out, K):
    # Rough per-time-step live bytes: double-buffered x (f32) and out (bf16)
    # blocks, halo + im2col scratches (bf16), f32 intermediates.
    per_t = (2 * C_in * 4 + 2 * C_out * 2
             + (C_in + C_out) * 2
             + K * (C_in + C_out) * 2
             + 3 * C_out * 4)
    budget = 24 * 1024 * 1024            # per-step working-set target
    if T <= 128 or T * per_t <= budget:
        return T
    cands = [c for c in range(128, T, 128)
             if T % c == 0 and c >= padding and c * per_t <= budget]
    return max(cands) if cands else T


def _vmem_limit_bytes(per_step_bytes):
    cap = 128 * 1024 * 1024
    try:
        cap = int(getattr(pltpu.get_tpu_info(), "vmem_capacity_bytes", cap))
    except Exception:
        pass
    want = max(32 * 1024 * 1024, 3 * int(per_step_bytes))
    # leave headroom below physical VMEM (-> ~48 MiB cap on v7x, 96 MiB on v5e/v6e)
    return int(min(want, cap * 3 // 4))


# --------------------------------------------------------------------------
# Wrapper: weight packing + pallas_call
# --------------------------------------------------------------------------
def tcn_block_forward(x, w1_t, b1, w2_t, b2, wd_t, bd, *,
                      kernel_size, stride, dilation, padding,
                      out_dtype=jnp.bfloat16, t_tile=None):
    """TCN_block forward.

    x:    (B, C_in, T) float32 (PyTorch NCL layout, kept as-is).
    w1_t: (C_out, C_in, K), w2_t: (C_out, C_out, K) effective (already
          weight-normalized) conv weights in torch OIK layout.
    wd_t: (C_out, C_in, 1) 1x1 downsample weight or None; b1/b2/bd: (C_out,).
    Returns (B, C_out, T) in out_dtype (bf16 by default).
    """
    assert stride == 1
    assert padding == (kernel_size - 1) * dilation and padding > 0

    B, C_in, T = x.shape
    C_out = w1_t.shape[0]
    K = kernel_size
    has_downsample = wd_t is not None
    if not has_downsample:
        assert C_in == C_out, "identity residual requires n_inputs == n_outputs"

    if t_tile is None:
        Tt = _choose_t_tile(T, padding, C_in, C_out, K)
    else:
        Tt = int(t_tile)
        assert T % Tt == 0 and (Tt == T or Tt % 128 == 0)
    assert T % Tt == 0
    nt = T // Tt
    if nt > 1:
        assert Tt >= padding, "T tile must cover the causal receptive field"
    off = _round_up(padding, 128)        # aligned data offset inside halo bufs

    bf16 = jnp.bfloat16
    f32 = jnp.float32
    x = x.astype(f32)                    # no wrapper-side bf16 pass over x
    # Stack the K taps along the contraction dim: column index = k*C + c.
    w1s = jnp.transpose(w1_t, (0, 2, 1)).reshape(C_out, K * C_in).astype(bf16)
    w2s = jnp.transpose(w2_t, (0, 2, 1)).reshape(C_out, K * C_out).astype(bf16)
    b1c = b1.reshape(C_out, 1).astype(f32)
    b2c = b2.reshape(C_out, 1).astype(f32)

    inputs = [x, w1s, b1c, w2s, b2c]
    in_specs = [
        pl.BlockSpec((1, C_in, Tt), lambda b, t: (b, 0, t)),     # x (f32, NCL)
        pl.BlockSpec((C_out, K * C_in), lambda b, t: (0, 0)),    # w1 stacked
        pl.BlockSpec((C_out, 1), lambda b, t: (0, 0)),           # b1
        pl.BlockSpec((C_out, K * C_out), lambda b, t: (0, 0)),   # w2 stacked
        pl.BlockSpec((C_out, 1), lambda b, t: (0, 0)),           # b2
    ]
    flops = 2 * B * T * (K * C_in * C_out + K * C_out * C_out)
    weight_bytes = int(w1s.size * 2 + w2s.size * 2 + 2 * C_out * 4)
    if has_downsample:
        wdm = wd_t[:, :, 0].astype(bf16)                         # (C_out, C_in)
        bdc = bd.reshape(C_out, 1).astype(f32)
        inputs += [wdm, bdc]
        in_specs += [pl.BlockSpec((C_out, C_in), lambda b, t: (0, 0)),
                     pl.BlockSpec((C_out, 1), lambda b, t: (0, 0))]
        flops += 2 * B * T * C_in * C_out
        weight_bytes += int(wdm.size * 2 + C_out * 4)

    scratch_shapes = [
        pltpu.VMEM((C_in, off + Tt), bf16),      # x + causal halo
        pltpu.VMEM((C_out, off + Tt), bf16),     # h + causal halo
        pltpu.VMEM((K * C_in, Tt), bf16),        # im2col scratch for conv1
        pltpu.VMEM((K * C_out, Tt), bf16),       # im2col scratch for conv2
    ]

    out_elem = jnp.dtype(out_dtype).itemsize
    scratch_bytes = 2 * ((C_in + C_out) * (off + Tt) + K * (C_in + C_out) * Tt)
    per_step_bytes = (2 * C_in * Tt * 4            # x block, double buffered
                      + 2 * C_out * Tt * out_elem  # out block, double buffered
                      + scratch_bytes
                      + 3 * C_out * Tt * 4         # f32 intermediates
                      + 2 * weight_bytes)
    bytes_accessed = int(B * C_in * T * 4 + B * C_out * T * out_elem
                         + weight_bytes)

    kern = _make_kernel(kernel_size=K, dilation=dilation, padding=padding,
                        t_tile=Tt, halo_off=off, has_downsample=has_downsample)

    out = pl.pallas_call(
        kern,
        out_shape=jax.ShapeDtypeStruct((B, C_out, T), out_dtype),
        grid_spec=pltpu.PrefetchScalarGridSpec(
            num_scalar_prefetch=0,
            grid=(B, nt),
            in_specs=in_specs,
            out_specs=pl.BlockSpec((1, C_out, Tt), lambda b, t: (b, 0, t)),
            scratch_shapes=scratch_shapes,
        ),
        compiler_params=pltpu.CompilerParams(
            # T tiles share a causal-halo carry in scratch -> sequential.
            dimension_semantics=("parallel", "arbitrary"),
            vmem_limit_bytes=_vmem_limit_bytes(per_step_bytes),
        ),
        cost_estimate=pl.CostEstimate(flops=int(flops), transcendentals=0,
                                      bytes_accessed=bytes_accessed),
    )(*inputs)
    return out


# --------------------------------------------------------------------------
# Helpers: weight_norm math + pure-JAX reference (mirrors kernel numerics:
# bf16 operands into every matmul, f32 accumulation, f32 identity residual).
# --------------------------------------------------------------------------
def weight_norm_effective(v, g):
    # PyTorch weight_norm default dim=0: per-output-channel norm over (C_in, K).
    norm = jnp.sqrt(jnp.sum(v * v, axis=(1, 2), keepdims=True))
    return g[:, None, None] * v / norm


def ref_forward(x, w1_t, b1, w2_t, b2, wd_t, bd, *, dilation, padding):
    f32 = jnp.float32
    bf = lambda a: a.astype(jnp.bfloat16).astype(f32)

    def causal_conv(inp, w, b):
        y = jax.lax.conv_general_dilated(
            inp, w, window_strides=(1,), padding=[(padding, padding)],
            rhs_dilation=(dilation,), dimension_numbers=("NCH", "OIH", "NCH"),
            precision=jax.lax.Precision.HIGHEST)
        return y[:, :, :-padding] + b[None, :, None]

    h = jnp.maximum(causal_conv(bf(x), bf(w1_t), b1), 0.0)
    y = jnp.maximum(causal_conv(bf(h), bf(w2_t), b2), 0.0)
    if wd_t is None:
        res = x.astype(f32)          # kernel uses full-precision identity residual
    else:
        res = jnp.einsum("oi,bit->bot", bf(wd_t[:, :, 0]), bf(x),
                         precision=jax.lax.Precision.HIGHEST) + bd[None, :, None]
    return jnp.maximum(y + res, 0.0)


# --------------------------------------------------------------------------
if __name__ == "__main__":
    def run_case(B, C_in, C_out, T, K, dilation, key, t_tile=None):
        padding = (K - 1) * dilation
        ks = jax.random.split(key, 9)
        v1 = jax.random.normal(ks[0], (C_out, C_in, K), jnp.float32) * 0.01
        g1 = jax.random.uniform(ks[1], (C_out,), jnp.float32, 0.5, 1.5)
        b1 = jax.random.normal(ks[2], (C_out,), jnp.float32) * 0.1
        v2 = jax.random.normal(ks[3], (C_out, C_out, K), jnp.float32) * 0.01
        g2 = jax.random.uniform(ks[4], (C_out,), jnp.float32, 0.5, 1.5)
        b2 = jax.random.normal(ks[5], (C_out,), jnp.float32) * 0.1
        if C_in != C_out:   # downsample 1x1 conv
            wd_t = jax.random.normal(ks[6], (C_out, C_in, 1), jnp.float32) * 0.1
            bd = jax.random.normal(ks[7], (C_out,), jnp.float32) * 0.1
        else:               # identity residual
            wd_t, bd = None, None
        x = jax.random.normal(ks[8], (B, C_in, T), jnp.float32)

        w1_t = weight_norm_effective(v1, g1)
        w2_t = weight_norm_effective(v2, g2)

        out = tcn_block_forward(x, w1_t, b1, w2_t, b2, wd_t, bd,
                                kernel_size=K, stride=1,
                                dilation=dilation, padding=padding,
                                t_tile=t_tile)
        out = jax.block_until_ready(out)
        ref = ref_forward(x, w1_t, b1, w2_t, b2, wd_t, bd,
                          dilation=dilation, padding=padding)
        assert out.shape == (B, C_out, T)
        err = float(jnp.max(jnp.abs(out.astype(jnp.float32) - ref)))
        # bf16 output rounding dominates the tolerance (values are O(1)).
        assert err < 5e-2, f"max abs err {err}"

    k1, k2, k3, k4 = jax.random.split(jax.random.PRNGKey(0), 4)
    # config 1: n_inputs != n_outputs (1x1 downsample residual), single T tile
    run_case(B=2, C_in=4, C_out=8, T=16, K=3, dilation=2, key=k1)
    # config 2: n_inputs == n_outputs (identity residual, no wd/bd inputs)
    run_case(B=2, C_in=8, C_out=8, T=32, K=2, dilation=1, key=k2)
    # config 3: forced T tiling (exercises the causal-halo carry), identity res
    run_case(B=1, C_in=8, C_out=8, T=256, K=3, dilation=4, key=k3, t_tile=128)
    # config 4: forced T tiling + downsample residual
    run_case(B=2, C_in=4, C_out=8, T=256, K=2, dilation=8, key=k4, t_tile=128)
    print("KERNEL_OK")
</pallas_src>

<mosaic_0001>
module attributes {stable_mosaic.version = 11 : i64} {
  func.func @body(%arg0: i32, %arg1: i32, %arg2: memref<1x4x16xf32, #tpu.memory_space<vmem>>, %arg3: memref<8x12xbf16, #tpu.memory_space<vmem>>, %arg4: memref<8x1xf32, #tpu.memory_space<vmem>>, %arg5: memref<8x24xbf16, #tpu.memory_space<vmem>>, %arg6: memref<8x1xf32, #tpu.memory_space<vmem>>, %arg7: memref<8x4xbf16, #tpu.memory_space<vmem>>, %arg8: memref<8x1xf32, #tpu.memory_space<vmem>>, %arg9: memref<1x8x16xbf16, #tpu.memory_space<vmem>>, %arg10: memref<4x144xbf16, #tpu.memory_space<vmem>>, %arg11: memref<8x144xbf16, #tpu.memory_space<vmem>>, %arg12: memref<12x16xbf16, #tpu.memory_space<vmem>>, %arg13: memref<24x16xbf16, #tpu.memory_space<vmem>>) attributes {dimension_semantics = [#tpu.dimension_semantics<parallel>, #tpu.dimension_semantics<arbitrary>], iteration_bounds = array<i64: 2, 1>, scalar_prefetch = 0 : i64, scratch_operands = 4 : i64, tpu.core_type = #tpu.core_type<tc>, window_params = [{transform_indices = @transform_0, window_bounds = array<i64: 1, 4, 16>}, {pipeline_mode = #tpu.pipeline_mode<synchronous>, transform_indices = @transform_1, window_bounds = array<i64: 8, 12>}, {pipeline_mode = #tpu.pipeline_mode<synchronous>, transform_indices = @transform_2, window_bounds = array<i64: 8, 1>}, {pipeline_mode = #tpu.pipeline_mode<synchronous>, transform_indices = @transform_3, window_bounds = array<i64: 8, 24>}, {pipeline_mode = #tpu.pipeline_mode<synchronous>, transform_indices = @transform_4, window_bounds = array<i64: 8, 1>}, {pipeline_mode = #tpu.pipeline_mode<synchronous>, transform_indices = @transform_5, window_bounds = array<i64: 8, 4>}, {pipeline_mode = #tpu.pipeline_mode<synchronous>, transform_indices = @transform_6, window_bounds = array<i64: 8, 1>}, {transform_indices = @transform_7, window_bounds = array<i64: 1, 8, 16>}]} {
    %c0_i32 = arith.constant 0 : i32
    %0 = arith.cmpi eq, %arg1, %c0_i32 : i32
    %1 = arith.extui %0 : i1 to i32
    %c0_i32_0 = arith.constant 0 : i32
    %2 = arith.cmpi ne, %1, %c0_i32_0 : i32
    scf.if %2 {
      %cst_51 = arith.constant 0.000000e+00 : bf16
      %52 = vector.broadcast %cst_51 : bf16 to vector<4x4xbf16>
      %c0_52 = arith.constant 0 : index
      %c124_53 = arith.constant 124 : index
      %53 = vector.load %arg10[%c0_52, %c124_53] : memref<4x144xbf16, #tpu.memory_space<vmem>>, vector<4x4xbf16>
      tpu.vector_store %arg10[%c0_52, %c124_53], %52 {strides = array<i32>} : memref<4x144xbf16, #tpu.memory_space<vmem>>, vector<4x4xbf16>,
      %cst_54 = arith.constant 0.000000e+00 : bf16
      %54 = vector.broadcast %cst_54 : bf16 to vector<8x4xbf16>
      %c0_55 = arith.constant 0 : index
      %c124_56 = arith.constant 124 : index
      %55 = vector.load %arg11[%c0_55, %c124_56] : memref<8x144xbf16, #tpu.memory_space<vmem>>, vector<8x4xbf16>
      tpu.vector_store %arg11[%c0_55, %c124_56], %54 {strides = array<i32>} : memref<8x144xbf16, #tpu.memory_space<vmem>>, vector<8x4xbf16>,
    } else {
    }
    %c0 = arith.constant 0 : index
    %c0_1 = arith.constant 0 : index
    %c0_2 = arith.constant 0 : index
    %3 = vector.load %arg2[%c0, %c0_1, %c0_2] : memref<1x4x16xf32, #tpu.memory_space<vmem>>, vector<1x4x16xf32>
    %4 = vector.shape_cast %3 : vector<1x4x16xf32> to vector<4x16xf32>
    %5 = arith.truncf %4 : vector<4x16xf32> to vector<4x16xbf16>
    %c0_3 = arith.constant 0 : index
    %c128 = arith.constant 128 : index
    %6 = vector.load %arg10[%c0_3, %c128] : memref<4x144xbf16, #tpu.memory_space<vmem>>, vector<4x16xbf16>
    tpu.vector_store %arg10[%c0_3, %c128], %5 {strides = array<i32>} : memref<4x144xbf16, #tpu.memory_space<vmem>>, vector<4x16xbf16>,
    %c0_4 = arith.constant 0 : index
    %c124 = arith.constant 124 : index
    %7 = vector.load %arg10[%c0_4, %c124] : memref<4x144xbf16, #tpu.memory_space<vmem>>, vector<4x16xbf16>
    %c0_5 = arith.constant 0 : index
    %c0_6 = arith.constant 0 : index
    %8 = vector.load %arg12[%c0_5, %c0_6] : memref<12x16xbf16, #tpu.memory_space<vmem>>, vector<4x16xbf16>
    tpu.vector_store %arg12[%c0_5, %c0_6], %7 {strides = array<i32>} : memref<12x16xbf16, #tpu.memory_space<vmem>>, vector<4x16xbf16>,
    %c0_7 = arith.constant 0 : index
    %c126 = arith.constant 126 : index
    %9 = vector.load %arg10[%c0_7, %c126] : memref<4x144xbf16, #tpu.memory_space<vmem>>, vector<4x16xbf16>
    %c4 = arith.constant 4 : index
    %c0_8 = arith.constant 0 : index
    %10 = vector.load %arg12[%c4, %c0_8] : memref<12x16xbf16, #tpu.memory_space<vmem>>, vector<4x16xbf16>
    tpu.vector_store %arg12[%c4, %c0_8], %9 {strides = array<i32>} : memref<12x16xbf16, #tpu.memory_space<vmem>>, vector<4x16xbf16>,
    %c0_9 = arith.constant 0 : index
    %c128_10 = arith.constant 128 : index
    %11 = vector.load %arg10[%c0_9, %c128_10] : memref<4x144xbf16, #tpu.memory_space<vmem>>, vector<4x16xbf16>
    %c8 = arith.constant 8 : index
    %c0_11 = arith.constant 0 : index
    %12 = vector.load %arg12[%c8, %c0_11] : memref<12x16xbf16, #tpu.memory_space<vmem>>, vector<4x16xbf16>
    tpu.vector_store %arg12[%c8, %c0_11], %11 {strides = array<i32>} : memref<12x16xbf16, #tpu.memory_space<vmem>>, vector<4x16xbf16>,
    %c0_12 = arith.constant 0 : index
    %c0_13 = arith.constant 0 : index
    %13 = vector.load %arg3[%c0_12, %c0_13] : memref<8x12xbf16, #tpu.memory_space<vmem>>, vector<8x12xbf16>
    %c0_14 = arith.constant 0 : index
    %c0_15 = arith.constant 0 : index
    %14 = vector.load %arg12[%c0_14, %c0_15] : memref<12x16xbf16, #tpu.memory_space<vmem>>, vector<12x16xbf16>
    %cst = arith.constant dense<0.000000e+00> : vector<8x16xf32>
    %15 = tpu.matmul %13, %14, %cst {dimension_numbers = #tpu.dot_dimension_numbers<[1], [0], [0], [1], [0, 0, 1, 1], [], []>} : vector<8x12xbf16>, vector<12x16xbf16>, vector<8x16xf32> -> vector<8x16xf32>
    %c0_16 = arith.constant 0 : index
    %c0_17 = arith.constant 0 : index
    %16 = vector.load %arg4[%c0_16, %c0_17] : memref<8x1xf32, #tpu.memory_space<vmem>>, vector<8x1xf32>
    %17 = vector.broadcast %16 : vector<8x1xf32> to vector<8x16xf32>
    %18 = arith.addf %15, %17 : vector<8x16xf32>
    %cst_18 = arith.constant 0.000000e+00 : f32
    %19 = vector.broadcast %cst_18 : f32 to vector<8x16xf32>
    %20 = arith.maximumf %18, %19 : vector<8x16xf32>
    %21 = arith.truncf %20 : vector<8x16xf32> to vector<8x16xbf16>
    %c0_19 = arith.constant 0 : index
    %c128_20 = arith.constant 128 : index
    %22 = vector.load %arg11[%c0_19, %c128_20] : memref<8x144xbf16, #tpu.memory_space<vmem>>, vector<8x16xbf16>
    tpu.vector_store %arg11[%c0_19, %c128_20], %21 {strides = array<i32>} : memref<8x144xbf16, #tpu.memory_space<vmem>>, vector<8x16xbf16>,
    %c0_21 = arith.constant 0 : index
    %c124_22 = arith.constant 124 : index
    %23 = vector.load %arg11[%c0_21, %c124_22] : memref<8x144xbf16, #tpu.memory_space<vmem>>, vector<8x16xbf16>
    %c0_23 = arith.constant 0 : index
    %c0_24 = arith.constant 0 : index
    %24 = vector.load %arg13[%c0_23, %c0_24] : memref<24x16xbf16, #tpu.memory_space<vmem>>, vector<8x16xbf16>
    tpu.vector_store %arg13[%c0_23, %c0_24], %23 {strides = array<i32>} : memref<24x16xbf16, #tpu.memory_space<vmem>>, vector<8x16xbf16>,
    %c0_25 = arith.constant 0 : index
    %c126_26 = arith.constant 126 : index
    %25 = vector.load %arg11[%c0_25, %c126_26] : memref<8x144xbf16, #tpu.memory_space<vmem>>, vector<8x16xbf16>
    %c8_27 = arith.constant 8 : index
    %c0_28 = arith.constant 0 : index
    %26 = vector.load %arg13[%c8_27, %c0_28] : memref<24x16xbf16, #tpu.memory_space<vmem>>, vector<8x16xbf16>
    tpu.vector_store %arg13[%c8_27, %c0_28], %25 {strides = array<i32>} : memref<24x16xbf16, #tpu.memory_space<vmem>>, vector<8x16xbf16>,
    %c0_29 = arith.constant 0 : index
    %c128_30 = arith.constant 128 : index
    %27 = vector.load %arg11[%c0_29, %c128_30] : memref<8x144xbf16, #tpu.memory_space<vmem>>, vector<8x16xbf16>
    %c16 = arith.constant 16 : index
    %c0_31 = arith.constant 0 : index
    %28 = vector.load %arg13[%c16, %c0_31] : memref<24x16xbf16, #tpu.memory_space<vmem>>, vector<8x16xbf16>
    tpu.vector_store %arg13[%c16, %c0_31], %27 {strides = array<i32>} : memref<24x16xbf16, #tpu.memory_space<vmem>>, vector<8x16xbf16>,
    %c0_32 = arith.constant 0 : index
    %c0_33 = arith.constant 0 : index
    %29 = vector.load %arg5[%c0_32, %c0_33] : memref<8x24xbf16, #tpu.memory_space<vmem>>, vector<8x24xbf16>
    %c0_34 = arith.constant 0 : index
    %c0_35 = arith.constant 0 : index
    %30 = vector.load %arg13[%c0_34, %c0_35] : memref<24x16xbf16, #tpu.memory_space<vmem>>, vector<24x16xbf16>
    %cst_36 = arith.constant dense<0.000000e+00> : vector<8x16xf32>
    %31 = tpu.matmul %29, %30, %cst_36 {dimension_numbers = #tpu.dot_dimension_numbers<[1], [0], [0], [1], [0, 0, 1, 1], [], []>} : vector<8x24xbf16>, vector<24x16xbf16>, vector<8x16xf32> -> vector<8x16xf32>
    %c0_37 = arith.constant 0 : index
    %c0_38 = arith.constant 0 : index
    %32 = vector.load %arg6[%c0_37, %c0_38] : memref<8x1xf32, #tpu.memory_space<vmem>>, vector<8x1xf32>
    %33 = vector.broadcast %32 : vector<8x1xf32> to vector<8x16xf32>
    %34 = arith.addf %31, %33 : vector<8x16xf32>
    %cst_39 = arith.constant 0.000000e+00 : f32
    %35 = vector.broadcast %cst_39 : f32 to vector<8x16xf32>
    %36 = arith.maximumf %34, %35 : vector<8x16xf32>
    %c0_40 = arith.constant 0 : index
    %c0_41 = arith.constant 0 : index
    %37 = vector.load %arg7[%c0_40, %c0_41] : memref<8x4xbf16, #tpu.memory_space<vmem>>, vector<8x4xbf16>
    %cst_42 = arith.constant dense<0.000000e+00> : vector<8x16xf32>
    %38 = tpu.matmul %37, %5, %cst_42 {dimension_numbers = #tpu.dot_dimension_numbers<[1], [0], [0], [1], [0, 0, 1, 1], [], []>} : vector<8x4xbf16>, vector<4x16xbf16>, vector<8x16xf32> -> vector<8x16xf32>
    %c0_43 = arith.constant 0 : index
    %c0_44 = arith.constant 0 : index
    %39 = vector.load %arg8[%c0_43, %c0_44] : memref<8x1xf32, #tpu.memory_space<vmem>>, vector<8x1xf32>
    %40 = vector.broadcast %39 : vector<8x1xf32> to vector<8x16xf32>
    %41 = arith.addf %38, %40 : vector<8x16xf32>
    %42 = arith.addf %36, %41 : vector<8x16xf32>
    %cst_45 = arith.constant 0.000000e+00 : f32
    %43 = vector.broadcast %cst_45 : f32 to vector<8x16xf32>
    %44 = arith.maximumf %42, %43 : vector<8x16xf32>
    %45 = arith.truncf %44 : vector<8x16xf32> to vector<8x16xbf16>
    %c0_46 = arith.constant 0 : index
    %c0_47 = arith.constant 0 : index
    %c0_48 = arith.constant 0 : index
    %46 = vector.load %arg9[%c0_46, %c0_47, %c0_48] : memref<1x8x16xbf16, #tpu.memory_space<vmem>>, vector<1x8x16xbf16>
    %47 = vector.shape_cast %46 : vector<1x8x16xbf16> to vector<8x16xbf16>
    %48 = vector.shape_cast %45 : vector<8x16xbf16> to vector<1x8x16xbf16>
    tpu.vector_store %arg9[%c0_46, %c0_47, %c0_48], %48 {strides = array<i32>} : memref<1x8x16xbf16, #tpu.memory_space<vmem>>, vector<1x8x16xbf16>,
    %c0_i32_49 = arith.constant 0 : i32
    %49 = arith.cmpi slt, %arg1, %c0_i32_49 : i32
    %50 = arith.extui %49 : i1 to i32
    %c0_i32_50 = arith.constant 0 : i32
    %51 = arith.cmpi ne, %50, %c0_i32_50 : i32
    scf.if %51 {
      %c0_51 = arith.constant 0 : index
      %c140 = arith.constant 140 : index
      %52 = vector.load %arg10[%c0_51, %c140] : memref<4x144xbf16, #tpu.memory_space<vmem>>, vector<4x4xbf16>
      %c0_52 = arith.constant 0 : index
      %c124_53 = arith.constant 124 : index
      %53 = vector.load %arg10[%c0_52, %c124_53] : memref<4x144xbf16, #tpu.memory_space<vmem>>, vector<4x4xbf16>
      tpu.vector_store %arg10[%c0_52, %c124_53], %52 {strides = array<i32>} : memref<4x144xbf16, #tpu.memory_space<vmem>>, vector<4x4xbf16>,
      %c0_54 = arith.constant 0 : index
      %c140_55 = arith.constant 140 : index
      %54 = vector.load %arg11[%c0_54, %c140_55] : memref<8x144xbf16, #tpu.memory_space<vmem>>, vector<8x4xbf16>
      %c0_56 = arith.constant 0 : index
      %c124_57 = arith.constant 124 : index
      %55 = vector.load %arg11[%c0_56, %c124_57] : memref<8x144xbf16, #tpu.memory_space<vmem>>, vector<8x4xbf16>
      tpu.vector_store %arg11[%c0_56, %c124_57], %54 {strides = array<i32>} : memref<8x144xbf16, #tpu.memory_space<vmem>>, vector<8x4xbf16>,
    } else {
    }
    return
  }
  func.func @transform_0(%arg0: i32, %arg1: i32) -> (i32, i32, i32) {
    %c0_i32 = arith.constant 0 : i32
    %c0_i32_0 = arith.constant 0 : i32
    return %arg0, %c0_i32, %arg1 : i32, i32, i32
  }
  func.func @transform_1(%arg0: i32, %arg1: i32) -> (i32, i32) {
    %c0_i32 = arith.constant 0 : i32
    %c0_i32_0 = arith.constant 0 : i32
    %c0_i32_1 = arith.constant 0 : i32
    return %c0_i32, %c0_i32_0 : i32, i32
  }
  func.func @transform_2(%arg0: i32, %arg1: i32) -> (i32, i32) {
    %c0_i32 = arith.constant 0 : i32
    %c0_i32_0 = arith.constant 0 : i32
    %c0_i32_1 = arith.constant 0 : i32
    return %c0_i32, %c0_i32_0 : i32, i32
  }
  func.func @transform_3(%arg0: i32, %arg1: i32) -> (i32, i32) {
    %c0_i32 = arith.constant 0 : i32
    %c0_i32_0 = arith.constant 0 : i32
    %c0_i32_1 = arith.constant 0 : i32
    return %c0_i32, %c0_i32_0 : i32, i32
  }
  func.func @transform_4(%arg0: i32, %arg1: i32) -> (i32, i32) {
    %c0_i32 = arith.constant 0 : i32
    %c0_i32_0 = arith.constant 0 : i32
    %c0_i32_1 = arith.constant 0 : i32
    return %c0_i32, %c0_i32_0 : i32, i32
  }
  func.func @transform_5(%arg0: i32, %arg1: i32) -> (i32, i32) {
    %c0_i32 = arith.constant 0 : i32
    %c0_i32_0 = arith.constant 0 : i32
    %c0_i32_1 = arith.constant 0 : i32
    return %c0_i32, %c0_i32_0 : i32, i32
  }
  func.func @transform_6(%arg0: i32, %arg1: i32) -> (i32, i32) {
    %c0_i32 = arith.constant 0 : i32
    %c0_i32_0 = arith.constant 0 : i32
    %c0_i32_1 = arith.constant 0 : i32
    return %c0_i32, %c0_i32_0 : i32, i32
  }
  func.func @transform_7(%arg0: i32, %arg1: i32) -> (i32, i32, i32) {
    %c0_i32 = arith.constant 0 : i32
    %c0_i32_0 = arith.constant 0 : i32
    return %arg0, %c0_i32, %arg1 : i32, i32, i32
  }
}

</mosaic_0001>

<llo_original>
// kernel: tpu_custom_call.1
$region0: #{tpu_custom_call.1}
  #allocation0 [shape = 'u32[]', space=smem, size = 0x4, offset = 0x4, fixed_abs, tag = 'smem constant byte address 0x4 - core index']
  #allocation1 [shape = 'u32[72,128]{1,0:T(1,128)}', space=vmem, size = 0x9000, scoped, tag = 'internal scratch']
  #allocation2 [shape = 'bf16[4,144]{1,0:T(4,128)(2,1)}', space=vmem, size = 0x800, scoped, tag = 'scratch operand']
  #allocation3 [shape = 'bf16[8,144]{1,0:T(8,128)(2,1)}', space=vmem, size = 0x1000, scoped, tag = 'scratch operand']
  #allocation4 [shape = 'bf16[12,16]{1,0:T(8,128)(2,1)}', space=vmem, size = 0x1000, scoped, tag = 'scratch operand']
  #allocation5 [shape = 'bf16[24,16]{1,0:T(8,128)(2,1)}', space=vmem, size = 0x1800, scoped, tag = 'scratch operand']
  %s0 = inlined_call_operand.vmem [shape: f32[2,4,16], index: 0, kind: input, shape index: {}]
  %s1 = inlined_call_operand.vmem [shape: bf16[8,12], index: 1, kind: input, shape index: {}]
  %s2 = inlined_call_operand.vmem [shape: f32[8,1], index: 2, kind: input, shape index: {}]
  %s3 = inlined_call_operand.vmem [shape: bf16[8,24], index: 3, kind: input, shape index: {}]
  %s4 = inlined_call_operand.vmem [shape: f32[8,1], index: 4, kind: input, shape index: {}]
  %s5 = inlined_call_operand.vmem [shape: bf16[8,4], index: 5, kind: input, shape index: {}]
  %s6 = inlined_call_operand.vmem [shape: f32[8,1], index: 6, kind: input, shape index: {}]
  %s7 = inlined_call_operand.hbm [shape: bf16[2,8,16], index: 7, kind: output, shape index: {}]
  %s8 = sld [smem:[#allocation0]]
  $region69: #{tpu_custom_call.1} parent=0
    _
  %s10 = ssub.s32 1, %s8
  %s11 = scalar_select 0, %s10, %s8
  $region1: #{tpu_custom_call.1} parent=0
    #allocation6 [shape = 'u8[4096]{0}', space=vmem, size = 0x1000, scoped, tag = 'output window, operand 0']
    #allocation7 [shape = 's32[2]{0}', space=sflag, size = 0x8, scoped, tag = 'scoped memory for tpu_custom_call.1']
    %12 = vsyncpa [#allocation7], 0
    %s13 = scalar_lea.sflag [#allocation7], 1
    %14 = vsyncpa %s13, 0
    loop: start=0, step=1, limit=4
    $region2: #{tpu_custom_call.1} parent=1 // loop_pre_header
      _
    $region3: #{tpu_custom_call.1} parent=1 // loop_header
      %s16 = sphi 0, %s20
      %p17 = scmp.ge.s32.totalorder %s16, 4
      %s23 = sphi 0, %s35
      %s24 = sphi 0, %s31
      %s25 = sphi 0, %s23
      %s26 = sphi 0, %s24
      %s27 = sphi 0, %s25
      %s28 = sphi 0, %s26
      %s40 = sphi 0, %s42
      %s43 = sphi 0, %s40
      %s44 = sphi 0, %s43
      %s60 = sphi 0, %s44
      %s64 = sphi 0, %s64
      %s66 = sphi 0, %s64
      %s67 = sphi 0, %s66
      %s81 = sphi 0, %s67
      %s85 = sphi 0, %s85
      %s87 = sphi 0, %s85
      %s88 = sphi 0, %s87
      %s102 = sphi 0, %s88
      %s106 = sphi 0, %s106
      %s108 = sphi 0, %s106
      %s109 = sphi 0, %s108
      %s123 = sphi 0, %s109
      %s127 = sphi 0, %s127
      %s129 = sphi 0, %s127
      %s130 = sphi 0, %s129
      %s144 = sphi 0, %s130
      %s148 = sphi 0, %s148
      %s150 = sphi 0, %s148
      %s151 = sphi 0, %s150
      %s165 = sphi 0, %s151
      %s169 = sphi 0, %s169
      %s171 = sphi 0, %s169
      %s172 = sphi 0, %s171
      %s186 = sphi 0, %s172
      %s194 = sphi 0, %s196
      %s197 = sphi 0, %s194
      %s198 = sphi 0, %s197
      %s214 = sphi 0, %s198
    $region4: #{tpu_custom_call.1} parent=1 // loop_header_branch
      %19 = sbr.rel (%p17) target = $region8
    $region5: #{tpu_custom_call.1} parent=1 // loop_body
      %s21 = ssub.s32 %s16, 1
      %s22 = ssub.s32 %s16, 2
      %s29 = sadd.s32 1, %s24
      %p30 = scmp.ge.s32.totalorder %s29, 1
      %s31 = scalar_select %p30, 0, %s29
      %s32 = sadd.s32 1, %s23
      %s33 = scalar_select %p30, %s32, %s23
      %p34 = scmp.ge.s32.totalorder %s33, 2
      %s35 = scalar_select %p34, 0, %s33
      %s36 = ssub.s32 %s23, %s35
      %s37 = ssub.s32 %s24, %s31
      %s38 = sor.u32 %s36, %s37
      %p39 = scmp.eq.s32.totalorder %s38, 0
      %s41 = sadd.s32 %s40, 1
      %s42 = scalar_select %p39, %s40, %s41
      %p45 = pneg %p39
      %p46 = scmp.eq.s32.totalorder %s16, 1
      %p47 = por %p45, %p46
      %p48 = scmp.ne.s32.totalorder %s40, %s43
      %p49 = scmp.eq.s32.totalorder %s16, 0
      %p50 = por %p48, %p49
      %p51 = scmp.ne.s32.totalorder %s40, %s43
      %p52 = scmp.eq.s32.totalorder %s21, 1
      %p53 = por %p51, %p52
      %p54 = scmp.ne.s32.totalorder %s43, %s44
      %p55 = scmp.eq.s32.totalorder %s21, 0
      %p56 = por %p54, %p55
      %p57 = scmp.ne.s32.totalorder %s43, %s44
      %p58 = scmp.eq.s32.totalorder %s22, 1
      %p59 = por %p57, %p58
      %p61 = scmp.ne.s32.totalorder %s44, %s60
      %p62 = scmp.eq.s32.totalorder %s22, 0
      %p63 = por %p61, %p62
      %s65 = sadd.s32 %s64, 1
      %p68 = scmp.eq.s32.totalorder %s16, 1
      %p69 = scmp.ne.s32.totalorder %s64, %s66
      %p70 = scmp.eq.s32.totalorder %s16, 0
      %p71 = por %p69, %p70
      %p72 = scmp.ne.s32.totalorder %s64, %s66
      %p73 = scmp.eq.s32.totalorder %s21, 1
      %p74 = por %p72, %p73
      %p75 = scmp.ne.s32.totalorder %s66, %s67
      %p76 = scmp.eq.s32.totalorder %s21, 0
      %p77 = por %p75, %p76
      %p78 = scmp.ne.s32.totalorder %s66, %s67
      %p79 = scmp.eq.s32.totalorder %s22, 1
      %p80 = por %p78, %p79
      %p82 = scmp.ne.s32.totalorder %s67, %s81
      %p83 = scmp.eq.s32.totalorder %s22, 0
      %p84 = por %p82, %p83
      %s86 = sadd.s32 %s85, 1
      %p89 = scmp.eq.s32.totalorder %s16, 1
      %p90 = scmp.ne.s32.totalorder %s85, %s87
      %p91 = scmp.eq.s32.totalorder %s16, 0
      %p92 = por %p90, %p91
      %p93 = scmp.ne.s32.totalorder %s85, %s87
      %p94 = scmp.eq.s32.totalorder %s21, 1
      %p95 = por %p93, %p94
      %p96 = scmp.ne.s32.totalorder %s87, %s88
      %p97 = scmp.eq.s32.totalorder %s21, 0
      %p98 = por %p96, %p97
      %p99 = scmp.ne.s32.totalorder %s87, %s88
      %p100 = scmp.eq.s32.totalorder %s22, 1
      %p101 = por %p99, %p100
      %p103 = scmp.ne.s32.totalorder %s88, %s102
      %p104 = scmp.eq.s32.totalorder %s22, 0
      %p105 = por %p103, %p104
      %s107 = sadd.s32 %s106, 1
      %p110 = scmp.eq.s32.totalorder %s16, 1
      %p111 = scmp.ne.s32.totalorder %s106, %s108
      %p112 = scmp.eq.s32.totalorder %s16, 0
      %p113 = por %p111, %p112
      %p114 = scmp.ne.s32.totalorder %s106, %s108
      %p115 = scmp.eq.s32.totalorder %s21, 1
      %p116 = por %p114, %p115
      %p117 = scmp.ne.s32.totalorder %s108, %s109
      %p118 = scmp.eq.s32.totalorder %s21, 0
      %p119 = por %p117, %p118
      %p120 = scmp.ne.s32.totalorder %s108, %s109
      %p121 = scmp.eq.s32.totalorder %s22, 1
      %p122 = por %p120, %p121
      %p124 = scmp.ne.s32.totalorder %s109, %s123
      %p125 = scmp.eq.s32.totalorder %s22, 0
      %p126 = por %p124, %p125
      %s128 = sadd.s32 %s127, 1
      %p131 = scmp.eq.s32.totalorder %s16, 1
      %p132 = scmp.ne.s32.totalorder %s127, %s129
      %p133 = scmp.eq.s32.totalorder %s16, 0
      %p134 = por %p132, %p133
      %p135 = scmp.ne.s32.totalorder %s127, %s129
      %p136 = scmp.eq.s32.totalorder %s21, 1
      %p137 = por %p135, %p136
      %p138 = scmp.ne.s32.totalorder %s129, %s130
      %p139 = scmp.eq.s32.totalorder %s21, 0
      %p140 = por %p138, %p139
      %p141 = scmp.ne.s32.totalorder %s129, %s130
      %p142 = scmp.eq.s32.totalorder %s22, 1
      %p143 = por %p141, %p142
      %p145 = scmp.ne.s32.totalorder %s130, %s144
      %p146 = scmp.eq.s32.totalorder %s22, 0
      %p147 = por %p145, %p146
      %s149 = sadd.s32 %s148, 1
      %p152 = scmp.eq.s32.totalorder %s16, 1
      %p153 = scmp.ne.s32.totalorder %s148, %s150
      %p154 = scmp.eq.s32.totalorder %s16, 0
      %p155 = por %p153, %p154
      %p156 = scmp.ne.s32.totalorder %s148, %s150
      %p157 = scmp.eq.s32.totalorder %s21, 1
      %p158 = por %p156, %p157
      %p159 = scmp.ne.s32.totalorder %s150, %s151
      %p160 = scmp.eq.s32.totalorder %s21, 0
      %p161 = por %p159, %p160
      %p162 = scmp.ne.s32.totalorder %s150, %s151
      %p163 = scmp.eq.s32.totalorder %s22, 1
      %p164 = por %p162, %p163
      %p166 = scmp.ne.s32.totalorder %s151, %s165
      %p167 = scmp.eq.s32.totalorder %s22, 0
      %p168 = por %p166, %p167
      %s170 = sadd.s32 %s169, 1
      %p173 = scmp.eq.s32.totalorder %s16, 1
      %p174 = scmp.ne.s32.totalorder %s169, %s171
      %p175 = scmp.eq.s32.totalorder %s16, 0
      %p176 = por %p174, %p175
      %p177 = scmp.ne.s32.totalorder %s169, %s171
      %p178 = scmp.eq.s32.totalorder %s21, 1
      %p179 = por %p177, %p178
      %p180 = scmp.ne.s32.totalorder %s171, %s172
      %p181 = scmp.eq.s32.totalorder %s21, 0
      %p182 = por %p180, %p181
      %p183 = scmp.ne.s32.totalorder %s171, %s172
      %p184 = scmp.eq.s32.totalorder %s22, 1
      %p185 = por %p183, %p184
      %p187 = scmp.ne.s32.totalorder %s172, %s186
      %p188 = scmp.eq.s32.totalorder %s22, 0
      %p189 = por %p187, %p188
      %s190 = ssub.s32 %s23, %s35
      %s191 = ssub.s32 %s24, %s31
      %s192 = sor.u32 %s190, %s191
      %p193 = scmp.eq.s32.totalorder %s192, 0
      %s195 = sadd.s32 %s194, 1
      %s196 = scalar_select %p193, %s194, %s195
      %p199 = pneg %p193
      %p200 = scmp.eq.s32.totalorder %s16, 1
      %p201 = por %p199, %p200
      %p202 = scmp.ne.s32.totalorder %s194, %s197
      %p203 = scmp.eq.s32.totalorder %s16, 0
      %p204 = por %p202, %p203
      %p205 = scmp.ne.s32.totalorder %s194, %s197
      %p206 = scmp.eq.s32.totalorder %s21, 1
      %p207 = por %p205, %p206
      %p208 = scmp.ne.s32.totalorder %s197, %s198
      %p209 = scmp.eq.s32.totalorder %s21, 0
      %p210 = por %p208, %p209
      %p211 = scmp.ne.s32.totalorder %s197, %s198
      %p212 = scmp.eq.s32.totalorder %s22, 1
      %p213 = por %p211, %p212
      %p215 = scmp.ne.s32.totalorder %s198, %s214
      %p216 = scmp.eq.s32.totalorder %s22, 0
      %p217 = por %p215, %p216
      %p218 = scmp.le.s32.totalorder 1, %s16
      %p219 = scmp.lt.s32.totalorder %s16, 3
      %p220 = pnand %p218, %p219
      %p221 = pneg %p220
      // Predicated region
      $region9: #{tpu_custom_call.1} parent=5 // pred_check
        _
      $region10: #{tpu_custom_call.1} parent=5 // pred_check_branch
        %223 = sbr.rel (%p220) target = $region12
      $region11: #{tpu_custom_call.1} parent=5 // pred_region
        %s224 = ssub.s32 %s16, 1
        // Predicated region
        $region13: #{tpu_custom_call.1} parent=11 // pred_check
          %p225 = pneg %p77
        $region14: #{tpu_custom_call.1} parent=11 // pred_check_branch
          %227 = sbr.rel (%p225) target = $region16
        $region15: #{tpu_custom_call.1} parent=11 // pred_region
          _
        $region16: #{tpu_custom_call.1} parent=11 // pred_fallthru
          _
        // Predicated region
        $region17: #{tpu_custom_call.1} parent=11 // pred_check
          %p228 = pneg %p98
        $region18: #{tpu_custom_call.1} parent=11 // pred_check_branch
          %230 = sbr.rel (%p228) target = $region20
        $region19: #{tpu_custom_call.1} parent=11 // pred_region
          _
        $region20: #{tpu_custom_call.1} parent=11 // pred_fallthru
          _
        // Predicated region
        $region21: #{tpu_custom_call.1} parent=11 // pred_check
          %p231 = pneg %p119
        $region22: #{tpu_custom_call.1} parent=11 // pred_check_branch
          %233 = sbr.rel (%p231) target = $region24
        $region23: #{tpu_custom_call.1} parent=11 // pred_region
          _
        $region24: #{tpu_custom_call.1} parent=11 // pred_fallthru
          _
        // Predicated region
        $region25: #{tpu_custom_call.1} parent=11 // pred_check
          %p234 = pneg %p140
        $region26: #{tpu_custom_call.1} parent=11 // pred_check_branch
          %236 = sbr.rel (%p234) target = $region28
        $region27: #{tpu_custom_call.1} parent=11 // pred_region
          _
        $region28: #{tpu_custom_call.1} parent=11 // pred_fallthru
          _
        // Predicated region
        $region29: #{tpu_custom_call.1} parent=11 // pred_check
          %p237 = pneg %p161
        $region30: #{tpu_custom_call.1} parent=11 // pred_check_branch
          %239 = sbr.rel (%p237) target = $region32
        $region31: #{tpu_custom_call.1} parent=11 // pred_region
          _
        $region32: #{tpu_custom_call.1} parent=11 // pred_fallthru
          _
        // Predicated region
        $region33: #{tpu_custom_call.1} parent=11 // pred_check
          %p240 = pneg %p182
        $region34: #{tpu_custom_call.1} parent=11 // pred_check_branch
          %242 = sbr.rel (%p240) target = $region36
        $region35: #{tpu_custom_call.1} parent=11 // pred_region
          _
        $region36: #{tpu_custom_call.1} parent=11 // pred_fallthru
          _
      $region12: #{tpu_custom_call.1} parent=5 // pred_fallthru
        _
      %p243 = scmp.lt.s32.totalorder %s16, 2
      // Predicated region
      $region37: #{tpu_custom_call.1} parent=5 // pred_check
        %p244 = pneg %p243
      $region38: #{tpu_custom_call.1} parent=5 // pred_check_branch
        %246 = sbr.rel (%p244) target = $region40
      $region39: #{tpu_custom_call.1} parent=5 // pred_region
        // Predicated region
        $region41: #{tpu_custom_call.1} parent=39 // pred_check
          %p247 = pneg %p50
        $region42: #{tpu_custom_call.1} parent=39 // pred_check_branch
          %249 = sbr.rel (%p247) target = $region44
        $region43: #{tpu_custom_call.1} parent=39 // pred_region
          %p250 = scmp.lt.s32.totalorder %s23, 1
          %s251 = scalar_select %p250, %s23, 1
          %p252 = scmp.lt.s32.totalorder %s24, 0
          %s253 = scalar_select %p252, %s24, 0
          %s254 = sadd.s32 %s253, %s251
          %s255 = smul.addr %s254, 4
          %s256 = scalar_lea.vmem %s0, %s255
        $region44: #{tpu_custom_call.1} parent=39 // pred_fallthru
          _
      $region40: #{tpu_custom_call.1} parent=5 // pred_fallthru
        _
      %p257 = scmp.le.s32.totalorder 1, %s16
      %p258 = scmp.lt.s32.totalorder %s16, 3
      %p259 = pnand %p257, %p258
      %p260 = pneg %p259
      // Predicated region
      $region45: #{tpu_custom_call.1} parent=5 // pred_check
        _
      $region46: #{tpu_custom_call.1} parent=5 // pred_check_branch
        %262 = sbr.rel (%p259) target = $region48
      $region47: #{tpu_custom_call.1} parent=5 // pred_region
        %s263 = ssub.s32 %s16, 1
        %p264 = scmp.lt.s32.totalorder %s25, 1
        %s265 = scalar_select %p264, %s25, 1
        %p266 = scmp.lt.s32.totalorder %s26, 0
        %s267 = scalar_select %p266, %s26, 0
        %s268 = sadd.s32 %s267, %s265
        %s269 = smul.addr %s268, 4
        %s270 = scalar_lea.vmem %s0, %s269
        %p271 = pneg %p56
        %p272 = pneg %p53
        %p273 = pneg %p77
        %p274 = pneg %p74
        %p275 = pneg %p98
        %p276 = pneg %p95
        %p277 = pneg %p119
        %p278 = pneg %p116
        %p279 = pneg %p140
        %p280 = pneg %p137
        %p281 = pneg %p161
        %p282 = pneg %p158
        %p283 = pneg %p182
        %p284 = pneg %p179
        %p285 = pneg %p210
        %p286 = pneg %p207
        %s287 = sand.u32 %s197, 1
        %s288 = scalar_lea.sflag [#allocation7], %s287
        %s289 = sand.u32 %s197, 1
        %s290 = smul.addr %s289, 4
        %s291 = scalar_lea.vmem [#allocation6], %s290
        %p292 = scmp.lt.s32.totalorder %s25, 1
        %s293 = scalar_select %p292, %s25, 1
        %p294 = scmp.lt.s32.totalorder %s26, 0
        %s295 = scalar_select %p294, %s26, 0
        %s296 = sadd.s32 %s295, %s293
        %s297 = smul.addr %s296, 4
        %s298 = scalar_lea.vmem %s0, %s297
        %p300 = scmp.eq.s32.totalorder %s26, 0
        // Predicated region
        $region49: #{tpu_custom_call.1} parent=47 // pred_check
          %p301 = pneg %p300
        $region50: #{tpu_custom_call.1} parent=47 // pred_check_branch
          %303 = sbr.rel (%p301) target = $region52
        $region51: #{tpu_custom_call.1} parent=47 // pred_region
          %vm304 = vcmask 1042400
          %305 = vst.msk [vmem:[#allocation2] sm:$0x3] %vm304, 0
          %vm306 = vcmask 1044448
          %307 = vst.msk [vmem:[#allocation3] sm:$0xf] %vm306, 0
        $region52: #{tpu_custom_call.1} parent=47 // pred_fallthru
          _
        %v308 = vld [vmem:[%s298] sm:$0xf]
        %v309 = vpack.c.bf16 %v308, %v308
        %vm310 = vcmask 123904
        %311 = vst.msk [vmem:[#allocation2 + $0x2] sm:$0x3] %vm310, %v309
        %v312 = vld [vmem:[#allocation2] sm:$0xf]
        %314 = vst [vmem:[#allocation1] ss:$2 sm:$0xff] %v312
        %v315 = vld.sshfl [vmem:[#allocation1] sm:$0xff pattern:$0x75643120]
        %317 = vrot.lane.b32.xlu0 %v315, 4
        %v318 = vpop.permute.xlu0 %317
        %v319 = vrot.slane %v318, 4
        %vm320 = vcmask 31744
        %v321 = vsel %vm320, %v318, %v319
        %323 = vst.msk [vmem:[#allocation4] sm:$0x3] %vm310, %v321
        %v324 = vld [vmem:[#allocation2] sm:$0xf]
        %s326 = scalar_lea.vmem [#allocation1], 1
        %327 = vst [vmem:[%s326] ss:$2 sm:$0xff] %v324
        %v328 = vld.sshfl [vmem:[#allocation1] sm:$0xff pattern:$0x75643120]
        %330 = vrot.lane.b32.xlu0 %v328, 2
        %v331 = vpop.permute.xlu0 %330
        %v332 = vrot.slane %v331, 4
        %vm333 = vcmask 15360
        %v334 = vsel %vm333, %v331, %v332
        %vm336 = vcmask 125954
        %337 = vst.msk [vmem:[#allocation4] sm:$0xc] %vm336, %v334
        %v338 = vld [vmem:[#allocation2 + $0x2] sm:$0x3]
        %339 = vst.msk [vmem:[#allocation4 + $0x4] sm:$0x3] %vm310, %v338
        %v340 = vld [vmem:[%s1] sm:$0xf]
        %v341 = vld [vmem:[#allocation4] sm:$0xf]
        %v342 = vld [vmem:[#allocation4 + $0x4] sm:$0x3]
        %v343 = vld [vmem:[%s2] sm:$0xff]
        %345 = vset.pattern.permute.xlu0 0
        %346 = vperm.xlu0 %345, %v343
        %v347 = vpop.permute.xlu0 %346
        %v351 = vunpack.c.l.b16 %v341
        %v352 = vunpack.c.l.b16 %v342
        %v353 = vpack.c.b16 %v352, %v351
        %vm354 = vcmask 97280
        %v356 = vsel %vm354, %v340, 0
        %vm358 = vcmask 1045504
        %v360 = vsel %vm358, %v353, 0
        %362 = vmatpush.bf16.msra.mxu0 0
        %363 = vmatpush.bf16.msra.mxu0 0
        %364 = vmatpush.bf16.msra.mxu0 0
        %365 = vmatpush.bf16.msra.mxu0 0
        %366 = vmatpush.bf16.msra.mxu0 0
        %367 = vmatpush.bf16.msra.mxu0 0
        %368 = vmatpush.bf16.msra.mxu0 0
        %369 = vmatpush.bf16.msra.mxu0 %v360
        %370 = vmatmul.bf16.gmra.mxu0 %v356
        %v371 = vpop.f32.mrf.mxu0
        %v372 = vadd.f32 %v347, %v371
        %v373 = vpop.f32.mrf.mxu0
        %374 = vdwg.mxu0
        %v375 = vmax.f32 %v372, 0.0
        %v376 = vpack.c.bf16 %v375, %v375
        %vm377 = vcmask 125952
        %378 = vst.msk [vmem:[#allocation3 + $0x4] sm:$0xf] %vm377, %v376
        %v379 = vld [vmem:[#allocation3] sm:$0xff]
        %381 = vrot.lane.b32.xlu0 %v379, 4
        %v382 = vpop.permute.xlu0 %381
        %v383 = vrot.slane %v382, 4
        %v384 = vsel %vm320, %v382, %v383
        %386 = vst.msk [vmem:[#allocation5] sm:$0xf] %vm377, %v384
        %v387 = vld [vmem:[#allocation3] sm:$0xff]
        %389 = vrot.lane.b32.xlu0 %v387, 2
        %v390 = vpop.permute.xlu0 %389
        %v391 = vrot.slane %v390, 4
        %v392 = vsel %vm333, %v390, %v391
        %394 = vst.msk [vmem:[#allocation5 + $0x4] sm:$0xf] %vm377, %v392
        %v395 = vld [vmem:[#allocation3 + $0x4] sm:$0xf]
        %396 = vst.msk [vmem:[#allocation5 + $0x8] sm:$0xf] %vm377, %v395
        %v397 = vld [vmem:[%s3] sm:$0xf]
        %v398 = vld [vmem:[#allocation5] sm:$0xf]
        %v399 = vld [vmem:[#allocation5 + $0x4] sm:$0xf]
        %v400 = vld [vmem:[#allocation5 + $0x8] sm:$0xf]
        %v401 = vld [vmem:[%s4] sm:$0xff]
        %403 = vset.pattern.permute.xlu0 0
        %404 = vperm.xlu0 %403, %v401
        %v405 = vpop.permute.xlu0 %404
        %v410 = vunpack.c.l.b16 %v398
        %v411 = vunpack.c.l.b16 %v399
        %v412 = vunpack.c.l.b16 %v400
        %v413 = vpack.c.b16 %v411, %v410
        %v414 = vpack.c.b16 %v412, %v412
        %vm416 = vcmask 195584
        %v418 = vsel %vm416, %v397, 0
        %vm420 = vcmask 1043456
        %v422 = vsel %vm420, %v414, 0
        %424 = vmatpush.bf16.msra.mxu0 0
        %425 = vmatpush.bf16.msra.mxu0 0
        %426 = vmatpush.bf16.msra.mxu0 0
        %427 = vmatpush.bf16.msra.mxu0 0
        %428 = vmatpush.bf16.msra.mxu0 0
        %429 = vmatpush.bf16.msra.mxu0 0
        %430 = vmatpush.bf16.msra.mxu0 %v422
        %431 = vmatpush.bf16.msra.mxu0 %v413
        %432 = vmatmul.bf16.gmra.mxu0 %v418
        %v433 = vpop.f32.mrf.mxu0
        %v434 = vadd.f32 %v405, %v433
        %v435 = vpop.f32.mrf.mxu0
        %436 = vdwg.mxu0
        %v437 = vmax.f32 %v434, 0.0
        %v438 = vld [vmem:[%s5] sm:$0xf]
        %v439 = vld [vmem:[%s6] sm:$0xff]
        %441 = vset.pattern.permute.xlu0 0
        %442 = vperm.xlu0 %441, %v439
        %v443 = vpop.permute.xlu0 %442
        %vm445 = vcmask 31744
        %v447 = vsel %vm445, %v438, 0
        %vm449 = vcmask 1041408
        %v451 = vsel %vm449, %v309, 0
        %453 = vmatpush.bf16.msra.mxu0 0
        %454 = vmatpush.bf16.msra.mxu0 0
        %455 = vmatpush.bf16.msra.mxu0 0
        %456 = vmatpush.bf16.msra.mxu0 0
        %457 = vmatpush.bf16.msra.mxu0 0
        %458 = vmatpush.bf16.msra.mxu0 0
        %459 = vmatpush.bf16.msra.mxu0 0
        %460 = vmatpush.bf16.msra.mxu0 %v451
        %461 = vmatmul.bf16.gmra.mxu0 %v447
        %v462 = vpop.f32.mrf.mxu0
        %v463 = vadd.f32 %v443, %v462
        %v464 = vpop.f32.mrf.mxu0
        %465 = vdwg.mxu0
        %v466 = vadd.f32 %v437, %v463
        %v467 = vmax.f32 %v466, 0.0
        %v468 = vpack.c.bf16 %v467, %v467
        %469 = vst.msk [vmem:[%s291] sm:$0xf] %vm377, %v468
        %p470 = scmp.lt.s32.totalorder %s26, 0
        // Predicated region
        $region53: #{tpu_custom_call.1} parent=47 // pred_check
          %p471 = pneg %p470
        $region54: #{tpu_custom_call.1} parent=47 // pred_check_branch
          %473 = sbr.rel (%p471) target = $region56
        $region55: #{tpu_custom_call.1} parent=47 // pred_region
          %v474 = vld [vmem:[#allocation2 + $0x2] sm:$0x3]
          %476 = vrot.lane.b32.xlu0 %v474, 112
          %v477 = vpop.permute.xlu0 %476
          %vm479 = vcmask 1042400
          %480 = vst.msk [vmem:[#allocation2] sm:$0x3] %vm479, %v477
          %v481 = vld [vmem:[#allocation3 + $0x4] sm:$0xf]
          %483 = vrot.lane.b32.xlu0 %v481, 112
          %v484 = vpop.permute.xlu0 %483
          %vm486 = vcmask 1044448
          %487 = vst.msk [vmem:[#allocation3] sm:$0xf] %vm486, %v484
        $region56: #{tpu_custom_call.1} parent=47 // pred_fallthru
          _
        %s488 = sand.u32 %s197, 1
        %s489 = scalar_lea.sflag [#allocation7], %s488
        %s490 = sand.u32 %s197, 1
        %s491 = smul.addr %s490, 4
        %s492 = scalar_lea.vmem [#allocation6], %s491
        // Predicated region
        $region57: #{tpu_custom_call.1} parent=47 // pred_check
          %p493 = pneg %p207
        $region58: #{tpu_custom_call.1} parent=47 // pred_check_branch
          %495 = sbr.rel (%p493) target = $region60
        $region59: #{tpu_custom_call.1} parent=47 // pred_region
          %497 = vsyncadd %s489, 0
          %s498 = sadd.s32 %s26, %s25
          %s499 = smul.addr %s498, 4
          %s500 = scalar_lea.hbm %s7, %s499
          %s502 = sshll.u32 %s492, 4
          %s503 = int_to_ptr.vmem [resolvable:$true] %s502
          %s504 = sshll.u32 %s500, 4
          %s505 = int_to_ptr.hbm [resolvable:$true] %s504
          %507 = dma.vmem_to_hbm [thread:$0]  %s503, 64, %s505, %s489
        $region60: #{tpu_custom_call.1} parent=47 // pred_fallthru
          _
      $region48: #{tpu_custom_call.1} parent=5 // pred_fallthru
        _
      %p508 = scmp.le.s32.totalorder 2, %s16
      // Predicated region
      $region61: #{tpu_custom_call.1} parent=5 // pred_check
        %p509 = pneg %p508
      $region62: #{tpu_custom_call.1} parent=5 // pred_check_branch
        %511 = sbr.rel (%p509) target = $region64
      $region63: #{tpu_custom_call.1} parent=5 // pred_region
        %s512 = ssub.s32 %s16, 2
        // Predicated region
        $region65: #{tpu_custom_call.1} parent=63 // pred_check
          %p513 = pneg %p213
        $region66: #{tpu_custom_call.1} parent=63 // pred_check_branch
          %515 = sbr.rel (%p513) target = $region68
        $region67: #{tpu_custom_call.1} parent=63 // pred_region
          %s516 = sand.u32 %s198, 1
          %s517 = scalar_lea.sflag [#allocation7], %s516
          %s518 = sand.u32 %s198, 1
          %s519 = smul.addr %s518, 4
          %s520 = scalar_lea.vmem [#allocation6], %s519
          %522 = dma.done %s517, 64
        $region68: #{tpu_custom_call.1} parent=63 // pred_fallthru
          _
      $region64: #{tpu_custom_call.1} parent=5 // pred_fallthru
        _
    $region6: #{tpu_custom_call.1} parent=1 // loop_footer
      %s20 = sadd.s32 1, %s16
    $region7: #{tpu_custom_call.1} parent=1 // loop_footer_branch
      %15 = sbr.rel target = $region3
    $region8: #{tpu_custom_call.1} parent=1 // loop_exit
      _
    %523 = vsyncpa [#allocation7], 1
    %s524 = scalar_lea.sflag [#allocation7], 1
    %525 = vsyncpa %s524, 1

</llo_original>
